<compile_context>
chip_gen: v7x
topology: tpu7x:2x2x1
jax: 0.10.0
libtpu: 0.0.40
codegen_flags: <defaults>
</compile_context>

<pallas_src>
import functools

import jax
import jax.numpy as jnp
from jax.experimental import pallas as pl
from jax.experimental.pallas import tpu as pltpu


def _attn_dropout_kernel(x1_ref, x2_ref, x3_ref, *rest, scale_factor, dropout_p):
    # rest = (bits_ref, o_ref) when dropout_p > 0 else (o_ref,)
    o_ref = rest[-1]

    inv_scale = jnp.float32(1.0 / scale_factor)
    x1 = x1_ref[0] * inv_scale            # (TM, DK) -- fold scale into small operand
    x2 = x2_ref[0]                        # (S2, DK)
    x3 = x3_ref[0]                        # (S2, DV)

    # scores = (x1/scale) @ x2^T without materializing the transpose.
    s = jax.lax.dot_general(
        x1, x2,
        dimension_numbers=(((1,), (1,)), ((), ())),
        preferred_element_type=jnp.float32)                  # (TM, S2)

    # Numerically-stable softmax numerator; normalization deferred to output.
    m = jnp.max(s, axis=-1, keepdims=True)
    e = jnp.exp(s - m)
    l = jnp.sum(e, axis=-1, keepdims=True)                   # (TM, 1)

    if dropout_p > 0.0:
        bits_ref = rest[0]
        # Signed-integer threshold equivalent of: keep iff U[0,1) >= p.
        thresh = int(round(dropout_p * 4294967296.0)) - 2147483648
        thresh = max(min(thresh, 2147483647), -2147483648)
        keep = bits_ref[0] >= jnp.int32(thresh)               # (TM, S2) int compare
        e = jnp.where(keep, e, jnp.float32(0.0))
        row_scale = jnp.float32(1.0 / (1.0 - dropout_p)) / l  # (TM, 1)
    else:
        row_scale = 1.0 / l                                   # (TM, 1)

    # TODO(synk): optionally cast operands to bf16 here for 2-4x MXU throughput
    # (kept f32 to preserve tight parity with the f32 PyTorch reference).
    acc = jnp.dot(e.astype(x3.dtype), x3,
                  preferred_element_type=jnp.float32)         # (TM, DV)
    o_ref[0] = (acc * row_scale).astype(o_ref.dtype)


def _pick_tile(s1):
    for tm in (512, 256, 128, 64, 32, 16, 8):
        if s1 % tm == 0:
            return tm
    return s1  # small / odd S1: full extent


def model_forward(x1, x2, x3, *, dropout_p, scale_factor, key=None):
    """x1: (B, S1, DK), x2: (B, S2, DK), x3: (B, S2, DV) -> (B, S1, DV)."""
    B, S1, DK = x1.shape
    _, S2, _ = x2.shape
    _, _, DV = x3.shape
    assert x2.shape == (B, S2, DK) and x3.shape == (B, S2, DV)

    tm = _pick_tile(S1)
    grid = (B, S1 // tm)

    inputs = [x1, x2, x3]
    in_specs = [
        pl.BlockSpec((1, tm, DK), lambda b, mi: (b, mi, 0)),
        pl.BlockSpec((1, S2, DK), lambda b, mi: (b, 0, 0)),   # resident across S1 tiles
        pl.BlockSpec((1, S2, DV), lambda b, mi: (b, 0, 0)),   # resident across S1 tiles
    ]

    use_dropout = float(dropout_p) > 0.0
    if use_dropout:
        if key is None:
            key = jax.random.PRNGKey(0)
        # Raw uniform bits for the keep-mask; thresholded in integer space
        # inside the kernel. (RNG stream differs from PyTorch's but the
        # Bernoulli(1-p) / (1/(1-p)) training semantics match F.dropout.)
        bits = jax.random.bits(key, (B, S1, S2), dtype=jnp.uint32)
        bits = jax.lax.bitcast_convert_type(bits, jnp.int32)
        inputs.append(bits)
        in_specs.append(pl.BlockSpec((1, tm, S2), lambda b, mi: (b, mi, 0)))

    kernel = functools.partial(_attn_dropout_kernel,
                               scale_factor=float(scale_factor),
                               dropout_p=float(dropout_p))

    return pl.pallas_call(
        kernel,
        out_shape=jax.ShapeDtypeStruct((B, S1, DV), jnp.float32),
        grid=grid,
        in_specs=in_specs,
        out_specs=pl.BlockSpec((1, tm, DV), lambda b, mi: (b, mi, 0)),
        compiler_params=pltpu.CompilerParams(
            dimension_semantics=("parallel", "parallel")),
    )(*inputs)


def _reference_no_dropout(x1, x2, x3, scale_factor):
    s = jnp.einsum("bij,bkj->bik", x1, x2) / scale_factor
    p = jax.nn.softmax(s, axis=-1)
    return jnp.einsum("bik,bkd->bid", p, x3)


if __name__ == "__main__":
    key = jax.random.PRNGKey(0)
    k1, k2, k3, kd = jax.random.split(key, 4)

    # Small shapes consistent with the module's (B, S, D) matmul pattern.
    B, S1, S2, DK, DV = 2, 8, 128, 128, 128
    x1 = jax.random.normal(k1, (B, S1, DK), dtype=jnp.float32)
    x2 = jax.random.normal(k2, (B, S2, DK), dtype=jnp.float32)
    x3 = jax.random.normal(k3, (B, S2, DV), dtype=jnp.float32)

    dropout_p = 0.1
    scale_factor = float(DK) ** 0.5

    # Correctness check of the deterministic path (dropout_p = 0) vs pure-JAX
    # reference (tolerance accounts for default MXU matmul precision).
    out_det = jax.block_until_ready(
        model_forward(x1, x2, x3, dropout_p=0.0, scale_factor=scale_factor))
    ref_det = _reference_no_dropout(x1, x2, x3, scale_factor)
    assert out_det.shape == (B, S1, DV)
    assert jnp.allclose(out_det, ref_det, rtol=2e-2, atol=2e-2), float(
        jnp.max(jnp.abs(out_det - ref_det)))

    # Full forward with dropout enabled (training-mode semantics, like F.dropout).
    out = jax.block_until_ready(
        model_forward(x1, x2, x3, dropout_p=dropout_p,
                      scale_factor=scale_factor, key=kd))
    assert out.shape == (B, S1, DV)
    assert bool(jnp.all(jnp.isfinite(out)))
    print("KERNEL_OK")
</pallas_src>

<mosaic_0001>
module attributes {stable_mosaic.version = 11 : i64} {
  func.func @_attn_dropout_kernel(%arg0: i32, %arg1: i32, %arg2: memref<1x8x128xf32, #tpu.memory_space<vmem>>, %arg3: memref<1x128x128xf32, #tpu.memory_space<vmem>>, %arg4: memref<1x128x128xf32, #tpu.memory_space<vmem>>, %arg5: memref<1x8x128xf32, #tpu.memory_space<vmem>>) attributes {dimension_semantics = [#tpu.dimension_semantics<parallel>, #tpu.dimension_semantics<parallel>], iteration_bounds = array<i64: 2, 1>, scalar_prefetch = 0 : i64, scratch_operands = 0 : i64, tpu.core_type = #tpu.core_type<tc>, window_params = [{transform_indices = @transform_0, window_bounds = array<i64: 1, 8, 128>}, {transform_indices = @transform_1, window_bounds = array<i64: 1, 128, 128>}, {transform_indices = @transform_2, window_bounds = array<i64: 1, 128, 128>}, {transform_indices = @transform_3, window_bounds = array<i64: 1, 8, 128>}]} {
    %c0 = arith.constant 0 : index
    %c0_0 = arith.constant 0 : index
    %c0_1 = arith.constant 0 : index
    %0 = vector.load %arg2[%c0, %c0_0, %c0_1] : memref<1x8x128xf32, #tpu.memory_space<vmem>>, vector<1x8x128xf32>
    %1 = vector.shape_cast %0 : vector<1x8x128xf32> to vector<8x128xf32>
    %cst = arith.constant 0.0883883461 : f32
    %2 = vector.broadcast %cst : f32 to vector<8x128xf32>
    %3 = arith.mulf %1, %2 : vector<8x128xf32>
    %c0_2 = arith.constant 0 : index
    %c0_3 = arith.constant 0 : index
    %c0_4 = arith.constant 0 : index
    %4 = vector.load %arg3[%c0_2, %c0_3, %c0_4] : memref<1x128x128xf32, #tpu.memory_space<vmem>>, vector<1x128x128xf32>
    %5 = vector.shape_cast %4 : vector<1x128x128xf32> to vector<128x128xf32>
    %c0_5 = arith.constant 0 : index
    %c0_6 = arith.constant 0 : index
    %c0_7 = arith.constant 0 : index
    %6 = vector.load %arg4[%c0_5, %c0_6, %c0_7] : memref<1x128x128xf32, #tpu.memory_space<vmem>>, vector<1x128x128xf32>
    %7 = vector.shape_cast %6 : vector<1x128x128xf32> to vector<128x128xf32>
    %cst_8 = arith.constant dense<0.000000e+00> : vector<8x128xf32>
    %8 = tpu.matmul %3, %5, %cst_8 {dimension_numbers = #tpu.dot_dimension_numbers<[1], [1], [0], [0], [0, 0, 1, 0], [], []>} : vector<8x128xf32>, vector<128x128xf32>, vector<8x128xf32> -> vector<8x128xf32>
    %cst_9 = arith.constant dense<0xFF800000> : vector<8xf32>
    %9 = vector.multi_reduction <maximumf>, %8, %cst_9 [1] : vector<8x128xf32> to vector<8xf32>
    %10 = vector.shape_cast %9 : vector<8xf32> to vector<8x1xf32>
    %11 = vector.broadcast %10 : vector<8x1xf32> to vector<8x128xf32>
    %12 = arith.subf %8, %11 : vector<8x128xf32>
    %13 = math.exp %12 : vector<8x128xf32>
    %cst_10 = arith.constant dense<0.000000e+00> : vector<8xf32>
    %14 = vector.multi_reduction <add>, %13, %cst_10 [1] : vector<8x128xf32> to vector<8xf32>
    %15 = vector.shape_cast %14 : vector<8xf32> to vector<8x1xf32>
    %cst_11 = arith.constant 1.000000e+00 : f32
    %16 = vector.broadcast %cst_11 : f32 to vector<8x1xf32>
    %17 = arith.divf %16, %15 : vector<8x1xf32>
    %cst_12 = arith.constant dense<0.000000e+00> : vector<8x128xf32>
    %18 = tpu.matmul %13, %7, %cst_12 {dimension_numbers = #tpu.dot_dimension_numbers<[1], [0], [0], [1], [0, 0, 1, 1], [], []>} : vector<8x128xf32>, vector<128x128xf32>, vector<8x128xf32> -> vector<8x128xf32>
    %19 = vector.broadcast %17 : vector<8x1xf32> to vector<8x128xf32>
    %20 = arith.mulf %18, %19 : vector<8x128xf32>
    %c0_13 = arith.constant 0 : index
    %c0_14 = arith.constant 0 : index
    %c0_15 = arith.constant 0 : index
    %21 = vector.load %arg5[%c0_13, %c0_14, %c0_15] : memref<1x8x128xf32, #tpu.memory_space<vmem>>, vector<1x8x128xf32>
    %22 = vector.shape_cast %21 : vector<1x8x128xf32> to vector<8x128xf32>
    %23 = vector.shape_cast %20 : vector<8x128xf32> to vector<1x8x128xf32>
    tpu.vector_store %arg5[%c0_13, %c0_14, %c0_15], %23 {strides = array<i32>} : memref<1x8x128xf32, #tpu.memory_space<vmem>>, vector<1x8x128xf32>,
    return
  }
  func.func @transform_0(%arg0: i32, %arg1: i32) -> (i32, i32, i32) {
    %c0_i32 = arith.constant 0 : i32
    %c0_i32_0 = arith.constant 0 : i32
    return %arg0, %arg1, %c0_i32 : i32, i32, i32
  }
  func.func @transform_1(%arg0: i32, %arg1: i32) -> (i32, i32, i32) {
    %c0_i32 = arith.constant 0 : i32
    %c0_i32_0 = arith.constant 0 : i32
    %c0_i32_1 = arith.constant 0 : i32
    return %arg0, %c0_i32, %c0_i32_0 : i32, i32, i32
  }
  func.func @transform_2(%arg0: i32, %arg1: i32) -> (i32, i32, i32) {
    %c0_i32 = arith.constant 0 : i32
    %c0_i32_0 = arith.constant 0 : i32
    %c0_i32_1 = arith.constant 0 : i32
    return %arg0, %c0_i32, %c0_i32_0 : i32, i32, i32
  }
  func.func @transform_3(%arg0: i32, %arg1: i32) -> (i32, i32, i32) {
    %c0_i32 = arith.constant 0 : i32
    %c0_i32_0 = arith.constant 0 : i32
    return %arg0, %arg1, %c0_i32 : i32, i32, i32
  }
}

</mosaic_0001>

<llo_original>
// kernel: tpu_custom_call.1
$region0: #{tpu_custom_call.1}
  #allocation0 [shape = 'u32[]', space=smem, size = 0x4, offset = 0x4, fixed_abs, tag = 'smem constant byte address 0x4 - core index']
  #allocation1 [shape = 'u32[144,128]{1,0:T(1,128)}', space=vmem, size = 0x12000, scoped, tag = 'internal scratch']
  %s0 = inlined_call_operand.hbm [shape: f32[2,8,128], index: 0, kind: input, shape index: {}]
  %s1 = inlined_call_operand.hbm [shape: f32[2,128,128], index: 1, kind: input, shape index: {}]
  %s2 = inlined_call_operand.hbm [shape: f32[2,128,128], index: 2, kind: input, shape index: {}]
  %s3 = inlined_call_operand.hbm [shape: f32[2,8,128], index: 3, kind: output, shape index: {}]
  %s4 = sld [smem:[#allocation0]]
  $region57: #{tpu_custom_call.1} parent=0
    _
  %s6 = ssub.s32 1, %s4
  %s7 = scalar_select 0, %s6, %s4
  $region1: #{tpu_custom_call.1} parent=0
    #allocation2 [shape = 'u8[8192]{0}', space=vmem, size = 0x2000, scoped, tag = 'input window, operand 0']
    #allocation3 [shape = 's32[2]{0}', space=sflag, size = 0x8, scoped, tag = 'scoped memory for tpu_custom_call.1']
    #allocation4 [shape = 's32[2]{0}', space=sflag, size = 0x8, scoped, tag = 'scoped memory for tpu_custom_call.1']
    #allocation5 [shape = 'u8[131072]{0}', space=vmem, size = 0x20000, scoped, tag = 'input window, operand 1']
    #allocation6 [shape = 's32[2]{0}', space=sflag, size = 0x8, scoped, tag = 'scoped memory for tpu_custom_call.1']
    #allocation7 [shape = 'u8[131072]{0}', space=vmem, size = 0x20000, scoped, tag = 'input window, operand 2']
    #allocation8 [shape = 'u8[8192]{0}', space=vmem, size = 0x2000, scoped, tag = 'output window, operand 0']
    %8 = vsyncpa [#allocation3], 0
    %s9 = scalar_lea.sflag [#allocation3], 1
    %10 = vsyncpa %s9, 0
    %11 = vsyncpa [#allocation6], 0
    %s12 = scalar_lea.sflag [#allocation6], 1
    %13 = vsyncpa %s12, 0
    %14 = vsyncpa [#allocation4], 0
    %s15 = scalar_lea.sflag [#allocation4], 1
    %16 = vsyncpa %s15, 0
    loop: start=0, step=1, limit=4
    $region2: #{tpu_custom_call.1} parent=1 // loop_pre_header
      _
    $region3: #{tpu_custom_call.1} parent=1 // loop_header
      %s18 = sphi 0, %s22
      %p19 = scmp.ge.s32.totalorder %s18, 4
      %s25 = sphi 0, %s37
      %s26 = sphi 0, %s33
      %s27 = sphi 0, %s25
      %s28 = sphi 0, %s26
      %s29 = sphi 0, %s27
      %s30 = sphi 0, %s28
      %s42 = sphi 0, %s44
      %s45 = sphi 0, %s42
      %s46 = sphi 0, %s45
      %s62 = sphi 0, %s46
      %s68 = sphi 0, %s70
      %s71 = sphi 0, %s68
      %s72 = sphi 0, %s71
      %s88 = sphi 0, %s72
      %s94 = sphi 0, %s96
      %s97 = sphi 0, %s94
      %s98 = sphi 0, %s97
      %s114 = sphi 0, %s98
      %s122 = sphi 0, %s124
      %s125 = sphi 0, %s122
      %s126 = sphi 0, %s125
      %s142 = sphi 0, %s126
    $region4: #{tpu_custom_call.1} parent=1 // loop_header_branch
      %21 = sbr.rel (%p19) target = $region8
    $region5: #{tpu_custom_call.1} parent=1 // loop_body
      %s23 = ssub.s32 %s18, 1
      %s24 = ssub.s32 %s18, 2
      %s31 = sadd.s32 1, %s26
      %p32 = scmp.ge.s32.totalorder %s31, 1
      %s33 = scalar_select %p32, 0, %s31
      %s34 = sadd.s32 1, %s25
      %s35 = scalar_select %p32, %s34, %s25
      %p36 = scmp.ge.s32.totalorder %s35, 2
      %s37 = scalar_select %p36, 0, %s35
      %s38 = ssub.s32 %s25, %s37
      %s39 = ssub.s32 %s26, %s33
      %s40 = sor.u32 %s38, %s39
      %p41 = scmp.eq.s32.totalorder %s40, 0
      %s43 = sadd.s32 %s42, 1
      %s44 = scalar_select %p41, %s42, %s43
      %p47 = pneg %p41
      %p48 = scmp.eq.s32.totalorder %s18, 1
      %p49 = por %p47, %p48
      %p50 = scmp.ne.s32.totalorder %s42, %s45
      %p51 = scmp.eq.s32.totalorder %s18, 0
      %p52 = por %p50, %p51
      %p53 = scmp.ne.s32.totalorder %s42, %s45
      %p54 = scmp.eq.s32.totalorder %s23, 1
      %p55 = por %p53, %p54
      %p56 = scmp.ne.s32.totalorder %s45, %s46
      %p57 = scmp.eq.s32.totalorder %s23, 0
      %p58 = por %p56, %p57
      %p59 = scmp.ne.s32.totalorder %s45, %s46
      %p60 = scmp.eq.s32.totalorder %s24, 1
      %p61 = por %p59, %p60
      %p63 = scmp.ne.s32.totalorder %s46, %s62
      %p64 = scmp.eq.s32.totalorder %s24, 0
      %p65 = por %p63, %p64
      %s66 = ssub.s32 %s25, %s37
      %p67 = scmp.eq.s32.totalorder %s66, 0
      %s69 = sadd.s32 %s68, 1
      %s70 = scalar_select %p67, %s68, %s69
      %p73 = pneg %p67
      %p74 = scmp.eq.s32.totalorder %s18, 1
      %p75 = por %p73, %p74
      %p76 = scmp.ne.s32.totalorder %s68, %s71
      %p77 = scmp.eq.s32.totalorder %s18, 0
      %p78 = por %p76, %p77
      %p79 = scmp.ne.s32.totalorder %s68, %s71
      %p80 = scmp.eq.s32.totalorder %s23, 1
      %p81 = por %p79, %p80
      %p82 = scmp.ne.s32.totalorder %s71, %s72
      %p83 = scmp.eq.s32.totalorder %s23, 0
      %p84 = por %p82, %p83
      %p85 = scmp.ne.s32.totalorder %s71, %s72
      %p86 = scmp.eq.s32.totalorder %s24, 1
      %p87 = por %p85, %p86
      %p89 = scmp.ne.s32.totalorder %s72, %s88
      %p90 = scmp.eq.s32.totalorder %s24, 0
      %p91 = por %p89, %p90
      %s92 = ssub.s32 %s25, %s37
      %p93 = scmp.eq.s32.totalorder %s92, 0
      %s95 = sadd.s32 %s94, 1
      %s96 = scalar_select %p93, %s94, %s95
      %p99 = pneg %p93
      %p100 = scmp.eq.s32.totalorder %s18, 1
      %p101 = por %p99, %p100
      %p102 = scmp.ne.s32.totalorder %s94, %s97
      %p103 = scmp.eq.s32.totalorder %s18, 0
      %p104 = por %p102, %p103
      %p105 = scmp.ne.s32.totalorder %s94, %s97
      %p106 = scmp.eq.s32.totalorder %s23, 1
      %p107 = por %p105, %p106
      %p108 = scmp.ne.s32.totalorder %s97, %s98
      %p109 = scmp.eq.s32.totalorder %s23, 0
      %p110 = por %p108, %p109
      %p111 = scmp.ne.s32.totalorder %s97, %s98
      %p112 = scmp.eq.s32.totalorder %s24, 1
      %p113 = por %p111, %p112
      %p115 = scmp.ne.s32.totalorder %s98, %s114
      %p116 = scmp.eq.s32.totalorder %s24, 0
      %p117 = por %p115, %p116
      %s118 = ssub.s32 %s25, %s37
      %s119 = ssub.s32 %s26, %s33
      %s120 = sor.u32 %s118, %s119
      %p121 = scmp.eq.s32.totalorder %s120, 0
      %s123 = sadd.s32 %s122, 1
      %s124 = scalar_select %p121, %s122, %s123
      %p127 = pneg %p121
      %p128 = scmp.eq.s32.totalorder %s18, 1
      %p129 = por %p127, %p128
      %p130 = scmp.ne.s32.totalorder %s122, %s125
      %p131 = scmp.eq.s32.totalorder %s18, 0
      %p132 = por %p130, %p131
      %p133 = scmp.ne.s32.totalorder %s122, %s125
      %p134 = scmp.eq.s32.totalorder %s23, 1
      %p135 = por %p133, %p134
      %p136 = scmp.ne.s32.totalorder %s125, %s126
      %p137 = scmp.eq.s32.totalorder %s23, 0
      %p138 = por %p136, %p137
      %p139 = scmp.ne.s32.totalorder %s125, %s126
      %p140 = scmp.eq.s32.totalorder %s24, 1
      %p141 = por %p139, %p140
      %p143 = scmp.ne.s32.totalorder %s126, %s142
      %p144 = scmp.eq.s32.totalorder %s24, 0
      %p145 = por %p143, %p144
      %p146 = scmp.le.s32.totalorder 1, %s18
      %p147 = scmp.lt.s32.totalorder %s18, 3
      %p148 = pnand %p146, %p147
      %p149 = pneg %p148
      // Predicated region
      $region9: #{tpu_custom_call.1} parent=5 // pred_check
        _
      $region10: #{tpu_custom_call.1} parent=5 // pred_check_branch
        %151 = sbr.rel (%p148) target = $region12
      $region11: #{tpu_custom_call.1} parent=5 // pred_region
        %s152 = ssub.s32 %s18, 1
      $region12: #{tpu_custom_call.1} parent=5 // pred_fallthru
        _
      %p153 = scmp.lt.s32.totalorder %s18, 2
      // Predicated region
      $region13: #{tpu_custom_call.1} parent=5 // pred_check
        %p154 = pneg %p153
      $region14: #{tpu_custom_call.1} parent=5 // pred_check_branch
        %156 = sbr.rel (%p154) target = $region16
      $region15: #{tpu_custom_call.1} parent=5 // pred_region
        // Predicated region
        $region17: #{tpu_custom_call.1} parent=15 // pred_check
          %p157 = pneg %p52
        $region18: #{tpu_custom_call.1} parent=15 // pred_check_branch
          %159 = sbr.rel (%p157) target = $region20
        $region19: #{tpu_custom_call.1} parent=15 // pred_region
          %s160 = sand.u32 %s42, 1
          %s161 = scalar_lea.sflag [#allocation3], %s160
          %s162 = sand.u32 %s42, 1
          %s163 = smul.addr %s162, 8
          %s164 = scalar_lea.vmem [#allocation2], %s163
          %s166 = ssub.s32 128, 128
          %167 = vsyncadd %s161, %s166
          %s168 = sadd.s32 %s26, %s25
          %s169 = smul.addr %s168, 128
          %s170 = scalar_lea.hbm %s0, %s169
          %s172 = sshll.u32 %s164, 4
          %s173 = int_to_ptr.vmem [resolvable:$true] %s172
          %175 = dma.hbm_to_vmem [thread:$0]  %s170, 128, %s173, %s161
        $region20: #{tpu_custom_call.1} parent=15 // pred_fallthru
          _
        // Predicated region
        $region21: #{tpu_custom_call.1} parent=15 // pred_check
          %p176 = pneg %p78
        $region22: #{tpu_custom_call.1} parent=15 // pred_check_branch
          %178 = sbr.rel (%p176) target = $region24
        $region23: #{tpu_custom_call.1} parent=15 // pred_region
          %s179 = sand.u32 %s18, 1
          %s180 = scalar_lea.sflag [#allocation6], %s179
          %s181 = sand.u32 %s68, 1
          %s182 = smul.addr %s181, 128
          %s183 = scalar_lea.vmem [#allocation5], %s182
          %s185 = ssub.s32 2048, 2048
          %186 = vsyncadd %s180, %s185
          %s187 = smul.addr %s25, 16
          %s188 = smul.addr %s187, 128
          %s189 = scalar_lea.hbm %s1, %s188
          %s190 = sshll.u32 %s183, 4
          %s191 = int_to_ptr.vmem [resolvable:$true] %s190
          %196 = dma.hbm_to_vmem [thread:$0]  %s189, 2048, %s191, %s180, 128, 128, 8
        $region24: #{tpu_custom_call.1} parent=15 // pred_fallthru
          _
        // Predicated region
        $region25: #{tpu_custom_call.1} parent=15 // pred_check
          %p197 = pneg %p104
        $region26: #{tpu_custom_call.1} parent=15 // pred_check_branch
          %199 = sbr.rel (%p197) target = $region28
        $region27: #{tpu_custom_call.1} parent=15 // pred_region
          %s200 = sand.u32 %s18, 1
          %s201 = scalar_lea.sflag [#allocation6], %s200
          %s202 = sand.u32 %s94, 1
          %s203 = smul.addr %s202, 128
          %s204 = scalar_lea.vmem [#allocation7], %s203
          %s206 = ssub.s32 2048, 2048
          %207 = vsyncadd %s201, %s206
          %s208 = smul.addr %s25, 16
          %s209 = smul.addr %s208, 128
          %s210 = scalar_lea.hbm %s2, %s209
          %s211 = sshll.u32 %s204, 4
          %s212 = int_to_ptr.vmem [resolvable:$true] %s211
          %217 = dma.hbm_to_vmem [thread:$0]  %s210, 2048, %s212, %s201, 128, 128, 8
        $region28: #{tpu_custom_call.1} parent=15 // pred_fallthru
          _
      $region16: #{tpu_custom_call.1} parent=5 // pred_fallthru
        _
      %p218 = scmp.le.s32.totalorder 1, %s18
      %p219 = scmp.lt.s32.totalorder %s18, 3
      %p220 = pnand %p218, %p219
      %p221 = pneg %p220
      // Predicated region
      $region29: #{tpu_custom_call.1} parent=5 // pred_check
        _
      $region30: #{tpu_custom_call.1} parent=5 // pred_check_branch
        %223 = sbr.rel (%p220) target = $region32
      $region31: #{tpu_custom_call.1} parent=5 // pred_region
        %s224 = ssub.s32 %s18, 1
        %s225 = sand.u32 %s45, 1
        %s226 = scalar_lea.sflag [#allocation3], %s225
        %s227 = sand.u32 %s45, 1
        %s228 = smul.addr %s227, 8
        %s229 = scalar_lea.vmem [#allocation2], %s228
        // Predicated region
        $region33: #{tpu_custom_call.1} parent=31 // pred_check
          %p230 = pneg %p58
        $region34: #{tpu_custom_call.1} parent=31 // pred_check_branch
          %232 = sbr.rel (%p230) target = $region36
        $region35: #{tpu_custom_call.1} parent=31 // pred_region
          %233 = dma.done %s226, 128
        $region36: #{tpu_custom_call.1} parent=31 // pred_fallthru
          _
        %s234 = sand.u32 %s23, 1
        %s235 = scalar_lea.sflag [#allocation6], %s234
        %s236 = sand.u32 %s71, 1
        %s237 = smul.addr %s236, 128
        %s238 = scalar_lea.vmem [#allocation5], %s237
        // Predicated region
        $region37: #{tpu_custom_call.1} parent=31 // pred_check
          %p239 = pneg %p84
        $region38: #{tpu_custom_call.1} parent=31 // pred_check_branch
          %241 = sbr.rel (%p239) target = $region40
        $region39: #{tpu_custom_call.1} parent=31 // pred_region
          %242 = dma.done %s235, 2048
        $region40: #{tpu_custom_call.1} parent=31 // pred_fallthru
          _
        %s243 = sand.u32 %s23, 1
        %s244 = scalar_lea.sflag [#allocation6], %s243
        %s245 = sand.u32 %s97, 1
        %s246 = smul.addr %s245, 128
        %s247 = scalar_lea.vmem [#allocation7], %s246
        // Predicated region
        $region41: #{tpu_custom_call.1} parent=31 // pred_check
          %p248 = pneg %p110
        $region42: #{tpu_custom_call.1} parent=31 // pred_check_branch
          %250 = sbr.rel (%p248) target = $region44
        $region43: #{tpu_custom_call.1} parent=31 // pred_region
          %251 = dma.done %s244, 2048
        $region44: #{tpu_custom_call.1} parent=31 // pred_fallthru
          _
        %s252 = sand.u32 %s45, 1
        %s253 = scalar_lea.sflag [#allocation3], %s252
        %s254 = sand.u32 %s45, 1
        %s255 = smul.addr %s254, 8
        %s256 = scalar_lea.vmem [#allocation2], %s255
        %p257 = pneg %p58
        %p258 = pneg %p55
        %s259 = sand.u32 %s23, 1
        %s260 = scalar_lea.sflag [#allocation6], %s259
        %s261 = sand.u32 %s71, 1
        %s262 = smul.addr %s261, 128
        %s263 = scalar_lea.vmem [#allocation5], %s262
        %p264 = pneg %p84
        %p265 = pneg %p81
        %s266 = sand.u32 %s23, 1
        %s267 = scalar_lea.sflag [#allocation6], %s266
        %s268 = sand.u32 %s97, 1
        %s269 = smul.addr %s268, 128
        %s270 = scalar_lea.vmem [#allocation7], %s269
        %p271 = pneg %p110
        %p272 = pneg %p107
        %p273 = pneg %p138
        %p274 = pneg %p135
        %s275 = sand.u32 %s125, 1
        %s276 = scalar_lea.sflag [#allocation4], %s275
        %s277 = sand.u32 %s125, 1
        %s278 = smul.addr %s277, 8
        %s279 = scalar_lea.vmem [#allocation8], %s278
        %v280 = vld [vmem:[%s229] sm:$0xff]
        %v281 = vmul.f32 %v280, 0.088388346
        %v282 = vld [vmem:[%s238] sm:$0xff]
        %v283 = vld [vmem:[%s238 + $0x8] sm:$0xff]
        %v284 = vld [vmem:[%s238 + $0x10] sm:$0xff]
        %v285 = vld [vmem:[%s238 + $0x18] sm:$0xff]
        %v286 = vld [vmem:[%s238 + $0x20] sm:$0xff]
        %v287 = vld [vmem:[%s238 + $0x28] sm:$0xff]
        %v288 = vld [vmem:[%s238 + $0x30] sm:$0xff]
        %v289 = vld [vmem:[%s238 + $0x38] sm:$0xff]
        %v290 = vld [vmem:[%s238 + $0x40] sm:$0xff]
        %v291 = vld [vmem:[%s238 + $0x48] sm:$0xff]
        %v292 = vld [vmem:[%s238 + $0x50] sm:$0xff]
        %v293 = vld [vmem:[%s238 + $0x58] sm:$0xff]
        %v294 = vld [vmem:[%s238 + $0x60] sm:$0xff]
        %v295 = vld [vmem:[%s238 + $0x68] sm:$0xff]
        %v296 = vld [vmem:[%s238 + $0x70] sm:$0xff]
        %v297 = vld [vmem:[%s238 + $0x78] sm:$0xff]
        %v298 = vld [vmem:[%s247] sm:$0xff]
        %v299 = vld [vmem:[%s247 + $0x8] sm:$0xff]
        %v300 = vld [vmem:[%s247 + $0x10] sm:$0xff]
        %v301 = vld [vmem:[%s247 + $0x18] sm:$0xff]
        %v302 = vld [vmem:[%s247 + $0x20] sm:$0xff]
        %v303 = vld [vmem:[%s247 + $0x28] sm:$0xff]
        %v304 = vld [vmem:[%s247 + $0x30] sm:$0xff]
        %v305 = vld [vmem:[%s247 + $0x38] sm:$0xff]
        %v306 = vld [vmem:[%s247 + $0x40] sm:$0xff]
        %v307 = vld [vmem:[%s247 + $0x48] sm:$0xff]
        %v308 = vld [vmem:[%s247 + $0x50] sm:$0xff]
        %v309 = vld [vmem:[%s247 + $0x58] sm:$0xff]
        %v310 = vld [vmem:[%s247 + $0x60] sm:$0xff]
        %v311 = vld [vmem:[%s247 + $0x68] sm:$0xff]
        %v312 = vld [vmem:[%s247 + $0x70] sm:$0xff]
        %v313 = vld [vmem:[%s247 + $0x78] sm:$0xff]
        %314 = vmatprep.subr.mxu0 0.0
        %315 = vmatpush1.xpose.msra.mxu0 %v282
        %316 = vmatprep.subr.mxu0 0.0
        %317 = vmatpush1.xpose.msra.mxu0 %v283
        %318 = vmatprep.subr.mxu0 0.0
        %319 = vmatpush1.xpose.msra.mxu0 %v284
        %320 = vmatprep.subr.mxu0 0.0
        %321 = vmatpush1.xpose.msra.mxu0 %v285
        %322 = vmatprep.subr.mxu0 0.0
        %323 = vmatpush1.xpose.msra.mxu0 %v286
        %324 = vmatprep.subr.mxu0 0.0
        %325 = vmatpush1.xpose.msra.mxu0 %v287
        %326 = vmatprep.subr.mxu0 0.0
        %327 = vmatpush1.xpose.msra.mxu0 %v288
        %328 = vmatprep.subr.mxu0 0.0
        %329 = vmatpush1.xpose.msra.mxu0 %v289
        %330 = vmatprep.subr.mxu0 0.0
        %331 = vmatpush1.xpose.msra.mxu0 %v290
        %332 = vmatprep.subr.mxu0 0.0
        %333 = vmatpush1.xpose.msra.mxu0 %v291
        %334 = vmatprep.subr.mxu0 0.0
        %335 = vmatpush1.xpose.msra.mxu0 %v292
        %336 = vmatprep.subr.mxu0 0.0
        %337 = vmatpush1.xpose.msra.mxu0 %v293
        %338 = vmatprep.subr.mxu0 0.0
        %339 = vmatpush1.xpose.msra.mxu0 %v294
        %340 = vmatprep.subr.mxu0 0.0
        %341 = vmatpush1.xpose.msra.mxu0 %v295
        %342 = vmatprep.subr.mxu0 0.0
        %343 = vmatpush1.xpose.msra.mxu0 %v296
        %344 = vmatprep.subr.mxu0 0.0
        %345 = vmatpush1.xpose.msra.mxu0 %v297
        %346 = vmatprep.subr.mxu0 0.0
        %347 = vmatpush1.xpose.msra.mxu0 0.0
        %348 = vmatprep.subr.mxu0 0.0
        %349 = vmatpush1.xpose.msra.mxu0 0.0
        %350 = vmatprep.subr.mxu0 0.0
        %351 = vmatpush1.xpose.msra.mxu0 0.0
        %352 = vmatprep.subr.mxu0 0.0
        %353 = vmatpush1.xpose.msra.mxu0 0.0
        %354 = vmatprep.subr.mxu0 0.0
        %355 = vmatpush1.xpose.msra.mxu0 0.0
        %356 = vmatprep.subr.mxu0 0.0
        %357 = vmatpush1.xpose.msra.mxu0 0.0
        %358 = vmatprep.subr.mxu0 0.0
        %359 = vmatpush1.xpose.msra.mxu0 0.0
        %360 = vmatprep.subr.mxu0 0.0
        %361 = vmatpush1.xpose.msra.mxu0 0.0
        %362 = vmatprep.subr.mxu0 0.0
        %363 = vmatpush1.xpose.msra.mxu0 0.0
        %364 = vmatprep.subr.mxu0 0.0
        %365 = vmatpush1.xpose.msra.mxu0 0.0
        %366 = vmatprep.subr.mxu0 0.0
        %367 = vmatpush1.xpose.msra.mxu0 0.0
        %368 = vmatprep.subr.mxu0 0.0
        %369 = vmatpush1.xpose.msra.mxu0 0.0
        %370 = vmatprep.subr.mxu0 0.0
        %371 = vmatpush1.xpose.msra.mxu0 0.0
        %372 = vmatprep.subr.mxu0 0.0
        %373 = vmatpush1.xpose.msra.mxu0 0.0
        %374 = vmatprep.subr.mxu0 0.0
        %375 = vmatpush1.xpose.msra.mxu0 0.0
        %376 = vmatprep.subr.mxu0 0.0
        %377 = vmatpush1.xpose.msra.mxu0 0.0
        %378 = vmatprep.mubr.f32.mxu0 0.0
        %379 = vmatmul.mubr.f32.gmra.mrb[0].mxu0 %v281
        %v380 = vpop.f32.mrb[0].mxu0
        %v381 = vadd.f32 0.0, %v380
        %v382 = vpop.f32.mrb[0].mxu0
        %383 = vdwg.mxu0
        %384 = vmax.xlane.f32.xlu0 %v381
        %v385 = vpop.xlane.xlu0 %384
        %v386 = vsub.f32 %v381, %v385
        %v387 = vmul.f32 %v386, 1.442695
        %v388 = vpow.pop %v387
        %389 = vadd.xlane.f32.xlu0 %v388
        %v390 = vpop.xlane.xlu0 %389
        %v391 = vrcp.pop %v390
        %v392 = vmul.f32 1.0, %v391
        %393 = vmatprep.subr.mxu0 0.0
        %394 = vmatpush1.msra.mxu0 %v298
        %395 = vmatprep.subr.mxu0 0.0
        %396 = vmatpush1.msra.mxu0 %v299
        %397 = vmatprep.subr.mxu0 0.0
        %398 = vmatpush1.msra.mxu0 %v300
        %399 = vmatprep.subr.mxu0 0.0
        %400 = vmatpush1.msra.mxu0 %v301
        %401 = vmatprep.subr.mxu0 0.0
        %402 = vmatpush1.msra.mxu0 %v302
        %403 = vmatprep.subr.mxu0 0.0
        %404 = vmatpush1.msra.mxu0 %v303
        %405 = vmatprep.subr.mxu0 0.0
        %406 = vmatpush1.msra.mxu0 %v304
        %407 = vmatprep.subr.mxu0 0.0
        %408 = vmatpush1.msra.mxu0 %v305
        %409 = vmatprep.subr.mxu0 0.0
        %410 = vmatpush1.msra.mxu0 %v306
        %411 = vmatprep.subr.mxu0 0.0
        %412 = vmatpush1.msra.mxu0 %v307
        %413 = vmatprep.subr.mxu0 0.0
        %414 = vmatpush1.msra.mxu0 %v308
        %415 = vmatprep.subr.mxu0 0.0
        %416 = vmatpush1.msra.mxu0 %v309
        %417 = vmatprep.subr.mxu0 0.0
        %418 = vmatpush1.msra.mxu0 %v310
        %419 = vmatprep.subr.mxu0 0.0
        %420 = vmatpush1.msra.mxu0 %v311
        %421 = vmatprep.subr.mxu0 0.0
        %422 = vmatpush1.msra.mxu0 %v312
        %423 = vmatprep.subr.mxu0 0.0
        %424 = vmatpush1.msra.mxu0 %v313
        %425 = vmatprep.subr.mxu0 0.0
        %426 = vmatpush1.msra.mxu0 0.0
        %427 = vmatprep.subr.mxu0 0.0
        %428 = vmatpush1.msra.mxu0 0.0
        %429 = vmatprep.subr.mxu0 0.0
        %430 = vmatpush1.msra.mxu0 0.0
        %431 = vmatprep.subr.mxu0 0.0
        %432 = vmatpush1.msra.mxu0 0.0
        %433 = vmatprep.subr.mxu0 0.0
        %434 = vmatpush1.msra.mxu0 0.0
        %435 = vmatprep.subr.mxu0 0.0
        %436 = vmatpush1.msra.mxu0 0.0
        %437 = vmatprep.subr.mxu0 0.0
        %438 = vmatpush1.msra.mxu0 0.0
        %439 = vmatprep.subr.mxu0 0.0
        %440 = vmatpush1.msra.mxu0 0.0
        %441 = vmatprep.subr.mxu0 0.0
        %442 = vmatpush1.msra.mxu0 0.0
        %443 = vmatprep.subr.mxu0 0.0
        %444 = vmatpush1.msra.mxu0 0.0
        %445 = vmatprep.subr.mxu0 0.0
        %446 = vmatpush1.msra.mxu0 0.0
        %447 = vmatprep.subr.mxu0 0.0
        %448 = vmatpush1.msra.mxu0 0.0
        %449 = vmatprep.subr.mxu0 0.0
        %450 = vmatpush1.msra.mxu0 0.0
        %451 = vmatprep.subr.mxu0 0.0
        %452 = vmatpush1.msra.mxu0 0.0
        %453 = vmatprep.subr.mxu0 0.0
        %454 = vmatpush1.msra.mxu0 0.0
        %455 = vmatprep.subr.mxu0 0.0
        %456 = vmatpush1.msra.mxu0 0.0
        %457 = vmatprep.mubr.f32.mxu0 0.0
        %458 = vmatmul.mubr.f32.gmra.mrb[0].mxu0 %v388
        %v459 = vpop.f32.mrb[0].mxu0
        %v460 = vadd.f32 0.0, %v459
        %v461 = vpop.f32.mrb[0].mxu0
        %462 = vdwg.mxu0
        %v463 = vmul.f32 %v460, %v392
        %464 = vst [vmem:[%s279] sm:$0xff] %v463
        %s465 = sand.u32 %s125, 1
        %s466 = scalar_lea.sflag [#allocation4], %s465
        %s467 = sand.u32 %s125, 1
        %s468 = smul.addr %s467, 8
        %s469 = scalar_lea.vmem [#allocation8], %s468
        // Predicated region
        $region45: #{tpu_custom_call.1} parent=31 // pred_check
          %p470 = pneg %p135
        $region46: #{tpu_custom_call.1} parent=31 // pred_check_branch
          %472 = sbr.rel (%p470) target = $region48
        $region47: #{tpu_custom_call.1} parent=31 // pred_region
          %s474 = ssub.s32 128, 128
          %475 = vsyncadd %s466, %s474
          %s476 = sadd.s32 %s28, %s27
          %s477 = smul.addr %s476, 128
          %s478 = scalar_lea.hbm %s3, %s477
          %s480 = sshll.u32 %s469, 4
          %s481 = int_to_ptr.vmem [resolvable:$true] %s480
          %483 = dma.vmem_to_hbm [thread:$0]  %s481, 128, %s478, %s466
        $region48: #{tpu_custom_call.1} parent=31 // pred_fallthru
          _
      $region32: #{tpu_custom_call.1} parent=5 // pred_fallthru
        _
      %p484 = scmp.le.s32.totalorder 2, %s18
      // Predicated region
      $region49: #{tpu_custom_call.1} parent=5 // pred_check
        %p485 = pneg %p484
      $region50: #{tpu_custom_call.1} parent=5 // pred_check_branch
        %487 = sbr.rel (%p485) target = $region52
      $region51: #{tpu_custom_call.1} parent=5 // pred_region
        %s488 = ssub.s32 %s18, 2
        // Predicated region
        $region53: #{tpu_custom_call.1} parent=51 // pred_check
          %p489 = pneg %p141
        $region54: #{tpu_custom_call.1} parent=51 // pred_check_branch
          %491 = sbr.rel (%p489) target = $region56
        $region55: #{tpu_custom_call.1} parent=51 // pred_region
          %s492 = sand.u32 %s126, 1
          %s493 = scalar_lea.sflag [#allocation4], %s492
          %s494 = sand.u32 %s126, 1
          %s495 = smul.addr %s494, 8
          %s496 = scalar_lea.vmem [#allocation8], %s495
          %497 = dma.done %s493, 128
        $region56: #{tpu_custom_call.1} parent=51 // pred_fallthru
          _
      $region52: #{tpu_custom_call.1} parent=5 // pred_fallthru
        _
    $region6: #{tpu_custom_call.1} parent=1 // loop_footer
      %s22 = sadd.s32 1, %s18
    $region7: #{tpu_custom_call.1} parent=1 // loop_footer_branch
      %17 = sbr.rel target = $region3
    $region8: #{tpu_custom_call.1} parent=1 // loop_exit
      _
    %498 = vsyncpa [#allocation3], 1
    %s499 = scalar_lea.sflag [#allocation3], 1
    %500 = vsyncpa %s499, 1
    %501 = vsyncpa [#allocation6], 1
    %s502 = scalar_lea.sflag [#allocation6], 1
    %503 = vsyncpa %s502, 1
    %504 = vsyncpa [#allocation4], 1
    %s505 = scalar_lea.sflag [#allocation4], 1
    %506 = vsyncpa %s505, 1

</llo_original>
